<compile_context>
chip_gen: v7x
topology: tpu7x:2x2x1
jax: 0.10.0
libtpu: 0.0.40
codegen_flags: <defaults>
</compile_context>

<pallas_src>
import functools

import jax
import jax.numpy as jnp
from jax import lax
from jax.experimental import pallas as pl
from jax.experimental.pallas import tpu as pltpu


# ---------------------------------------------------------------------------
# Pass 1: LayerNorm + fused (all-heads) QKV projection.
# ---------------------------------------------------------------------------
def _ln_qkv_proj_kernel(q_ref, k_ref, v_ref, gamma_ref, beta_ref,
                        wq_ref, wk_ref, wv_ref,
                        qp_ref, kp_ref, vp_ref, *, eps, scale):
    gamma = gamma_ref[...].astype(jnp.float32)   # (1, D), broadcasts over rows
    beta = beta_ref[...].astype(jnp.float32)

    def layernorm_bf16(ref):
        x = ref[...].astype(jnp.float32)
        mu = jnp.mean(x, axis=-1, keepdims=True)
        xc = x - mu
        var = jnp.mean(xc * xc, axis=-1, keepdims=True)
        y = xc * lax.rsqrt(var + eps) * gamma + beta
        return y.astype(jnp.bfloat16)            # bf16 into the MXU

    qn = layernorm_bf16(q_ref)
    kn = layernorm_bf16(k_ref)
    vn = layernorm_bf16(v_ref)

    # bf16 x bf16 -> f32 accumulate; softmax scale folded into Q here.
    qp = jnp.dot(qn, wq_ref[...], preferred_element_type=jnp.float32)
    qp_ref[...] = (qp * scale).astype(qp_ref.dtype)
    kp_ref[...] = jnp.dot(kn, wk_ref[...],
                          preferred_element_type=jnp.float32).astype(kp_ref.dtype)
    vp_ref[...] = jnp.dot(vn, wv_ref[...],
                          preferred_element_type=jnp.float32).astype(vp_ref.dtype)


# ---------------------------------------------------------------------------
# Pass 2: flash attention (online softmax over KV tiles) + output projection
#         accumulated across head groups + bias + residual.
# Grid: (batch, q_tile, head_group, kv_tile); the two inner axes are
# "arbitrary" reduction axes (output block index depends only on (b, qi)).
# ---------------------------------------------------------------------------
def _flash_attn_outproj_kernel(q_ref, k_ref, v_ref, wo_ref, bo_ref, qres_ref,
                               o_ref, m_sc, l_sc, acc_o, acc_out, *, hpg):
    hg = pl.program_id(2)
    kv = pl.program_id(3)
    last_hg = pl.num_programs(2) - 1
    last_kv = pl.num_programs(3) - 1

    @pl.when(kv == 0)
    def _():
        m_sc[...] = jnp.full_like(m_sc, -jnp.inf)
        l_sc[...] = jnp.zeros_like(l_sc)
        acc_o[...] = jnp.zeros_like(acc_o)

    qh = q_ref[0]   # (hpg, TQ, dh) bf16, softmax scale already folded in
    kh = k_ref[0]   # (hpg, TK, dh) bf16
    vh = v_ref[0]   # (hpg, TK, dh) bf16

    # Per-head QK^T (contract dh), batched over the head group; no transpose.
    s = jnp.einsum('gqd,gkd->gqk', qh, kh,
                   preferred_element_type=jnp.float32)         # (hpg, TQ, TK)

    m_new = jnp.maximum(m_sc[...], jnp.max(s, axis=-1, keepdims=True))
    alpha = jnp.exp(m_sc[...] - m_new)
    p = jnp.exp(s - m_new)
    l_sc[...] = alpha * l_sc[...] + jnp.sum(p, axis=-1, keepdims=True)
    acc_o[...] = alpha * acc_o[...] + jnp.einsum(
        'gqk,gkd->gqd', p.astype(jnp.bfloat16), vh,
        preferred_element_type=jnp.float32)
    m_sc[...] = m_new

    @pl.when(kv == last_kv)
    def _():
        # Normalize this head group and fold it through its output-projection
        # slice; accumulate across head groups in f32 scratch.
        oh = (acc_o[...] * pl.reciprocal(l_sc[...], approx=True)
              ).astype(jnp.bfloat16)                           # (hpg, TQ, dh)
        contrib = jnp.dot(oh[0], wo_ref[0], preferred_element_type=jnp.float32)
        for g in range(1, hpg):
            contrib = contrib + jnp.dot(oh[g], wo_ref[g],
                                        preferred_element_type=jnp.float32)

        @pl.when(hg == 0)
        def _():
            acc_out[...] = contrib          # first group writes (no zero-init)

        @pl.when(hg > 0)
        def _():
            acc_out[...] = acc_out[...] + contrib

        @pl.when(hg == last_hg)
        def _():
            out = (acc_out[...] + bo_ref[...].astype(jnp.float32)
                   + qres_ref[0].astype(jnp.float32))
            o_ref[0] = out.astype(o_ref.dtype)


# ---------------------------------------------------------------------------
# Helpers.
# ---------------------------------------------------------------------------
def _pick_tile(n, cap):
    """Largest multiple-of-8 divisor of n that is <= cap, else n (full extent)."""
    if n <= cap:
        return n
    t = (cap // 8) * 8
    while t >= 8:
        if n % t == 0:
            return t
        t -= 8
    return n


def _pick_head_group(heads, dim_head, target_lanes=128):
    g = max(1, min(heads, target_lanes // max(dim_head, 1)))
    while heads % g != 0:
        g -= 1
    return max(g, 1)


def _block_bytes(shape, itemsize):
    """Rough padded VMEM footprint of one block / scratch buffer."""
    dims = list(shape)
    if len(dims) == 1:
        dims = [1] + dims
    dims[-1] = ((dims[-1] + 127) // 128) * 128
    dims[-2] = ((dims[-2] + 7) // 8) * 8
    n = 1
    for d in dims:
        n *= d
    return n * itemsize


def _vmem_limit(total_block_bytes):
    # 2x for double buffering plus generous headroom; clamp to [16, 64] MiB.
    return int(min(max(3 * total_block_bytes, 16 * 1024 * 1024),
                   64 * 1024 * 1024))


# ---------------------------------------------------------------------------
# Wrapper.
# ---------------------------------------------------------------------------
def prenorm_attention_qkv(q, k, v, params, *, heads, dim_head, eps=1e-5,
                          q_tile=None, kv_tile=None, row_tile=None):
    B, N, D = q.shape
    gamma, beta, wq, wk, wv, wo, bo = params
    inner = heads * dim_head
    assert wq.shape == (D, inner) and wo.shape == (inner, D)

    # -------------------- pass 1: LN + fused QKV projection ----------------
    rows = B * N
    if row_tile is None:
        row_tile = _pick_tile(rows, 512)
    assert rows % row_tile == 0

    q2 = q.reshape(rows, D)
    k2 = k.reshape(rows, D)
    v2 = v.reshape(rows, D)
    wq_b = wq.astype(jnp.bfloat16)
    wk_b = wk.astype(jnp.bfloat16)
    wv_b = wv.astype(jnp.bfloat16)
    scale = float(dim_head) ** -0.5

    row_spec = pl.BlockSpec((row_tile, D), lambda r: (r, 0))
    vec_spec1 = pl.BlockSpec((1, D), lambda r: (0, 0))
    w_spec = pl.BlockSpec((D, inner), lambda r: (0, 0))
    proj_spec = pl.BlockSpec((row_tile, inner), lambda r: (r, 0))

    in_itm = q.dtype.itemsize
    est1 = (3 * _block_bytes((row_tile, D), in_itm)
            + 2 * _block_bytes((1, D), 4)
            + 3 * _block_bytes((D, inner), 2)
            + 3 * _block_bytes((row_tile, inner), 2))

    qp, kp, vp = pl.pallas_call(
        functools.partial(_ln_qkv_proj_kernel, eps=eps, scale=scale),
        out_shape=(jax.ShapeDtypeStruct((rows, inner), jnp.bfloat16),
                   jax.ShapeDtypeStruct((rows, inner), jnp.bfloat16),
                   jax.ShapeDtypeStruct((rows, inner), jnp.bfloat16)),
        grid_spec=pltpu.PrefetchScalarGridSpec(
            num_scalar_prefetch=0,
            grid=(rows // row_tile,),
            in_specs=[row_spec, row_spec, row_spec, vec_spec1, vec_spec1,
                      w_spec, w_spec, w_spec],
            out_specs=[proj_spec, proj_spec, proj_spec]),
        compiler_params=pltpu.CompilerParams(
            dimension_semantics=("parallel",),
            vmem_limit_bytes=_vmem_limit(est1)),
    )(q2, k2, v2, gamma, beta, wq_b, wk_b, wv_b)

    # Per-head layout (wrapper-side layout plumbing, trace-time XLA ops).
    qh4 = qp.reshape(B, N, heads, dim_head).transpose(0, 2, 1, 3)  # (B,H,N,dh)
    kh4 = kp.reshape(B, N, heads, dim_head).transpose(0, 2, 1, 3)
    vh4 = vp.reshape(B, N, heads, dim_head).transpose(0, 2, 1, 3)
    wo3 = wo.reshape(heads, dim_head, D).astype(jnp.bfloat16)      # (H,dh,D)

    # -------------------- pass 2: flash attention + out proj ---------------
    if q_tile is None:
        q_tile = _pick_tile(N, 512)
    if kv_tile is None:
        kv_tile = _pick_tile(N, 512)
    assert N % q_tile == 0 and N % kv_tile == 0

    hpg = _pick_head_group(heads, dim_head)
    n_hg = heads // hpg

    q_spec = pl.BlockSpec((1, hpg, q_tile, dim_head),
                          lambda b, qi, hg, kv: (b, hg, qi, 0))
    kv_spec = pl.BlockSpec((1, hpg, kv_tile, dim_head),
                           lambda b, qi, hg, kv: (b, hg, kv, 0))
    wo_spec = pl.BlockSpec((hpg, dim_head, D), lambda b, qi, hg, kv: (hg, 0, 0))
    bo_spec = pl.BlockSpec((1, D), lambda b, qi, hg, kv: (0, 0))
    res_spec = pl.BlockSpec((1, q_tile, D), lambda b, qi, hg, kv: (b, qi, 0))
    o_spec = pl.BlockSpec((1, q_tile, D), lambda b, qi, hg, kv: (b, qi, 0))

    est2 = (_block_bytes((hpg, q_tile, dim_head), 2)
            + 2 * _block_bytes((hpg, kv_tile, dim_head), 2)
            + _block_bytes((hpg, dim_head, D), 2)
            + _block_bytes((1, D), 4)
            + 2 * _block_bytes((q_tile, D), in_itm)
            + 2 * _block_bytes((hpg, q_tile, 1), 4)
            + _block_bytes((hpg, q_tile, dim_head), 4)
            + _block_bytes((q_tile, D), 4))

    out = pl.pallas_call(
        functools.partial(_flash_attn_outproj_kernel, hpg=hpg),
        out_shape=jax.ShapeDtypeStruct((B, N, D), q.dtype),
        grid_spec=pltpu.PrefetchScalarGridSpec(
            num_scalar_prefetch=0,
            grid=(B, N // q_tile, n_hg, N // kv_tile),
            in_specs=[q_spec, kv_spec, kv_spec, wo_spec, bo_spec, res_spec],
            out_specs=o_spec,
            scratch_shapes=[
                pltpu.VMEM((hpg, q_tile, 1), jnp.float32),          # m
                pltpu.VMEM((hpg, q_tile, 1), jnp.float32),          # l
                pltpu.VMEM((hpg, q_tile, dim_head), jnp.float32),   # acc_o
                pltpu.VMEM((q_tile, D), jnp.float32)]),             # acc_out
        compiler_params=pltpu.CompilerParams(
            dimension_semantics=("parallel", "parallel",
                                 "arbitrary", "arbitrary"),
            vmem_limit_bytes=_vmem_limit(est2)),
    )(qh4, kh4, vh4, wo3, bo, q)
    return out


# ---------------------------------------------------------------------------
# Parameters + pure-JAX reference (mirrors the PyTorch forward).
# ---------------------------------------------------------------------------
def make_params(key, dim, heads, dim_head, dtype=jnp.float32):
    inner_dim = heads * dim_head
    ks = jax.random.split(key, 5)
    gamma = jnp.ones((1, dim), dtype)                       # nn.LayerNorm weight
    beta = jnp.zeros((1, dim), dtype)                       # nn.LayerNorm bias
    # nn.Linear weights stored pre-transposed as (in, out) so kernel does x @ W.
    wq = jax.random.normal(ks[0], (dim, inner_dim), dtype) * 0.02
    wk = jax.random.normal(ks[1], (dim, inner_dim), dtype) * 0.02
    wv = jax.random.normal(ks[2], (dim, inner_dim), dtype) * 0.02
    wo = jax.random.normal(ks[3], (inner_dim, dim), dtype) * 0.02
    bo = jax.random.normal(ks[4], (1, dim), dtype) * 0.02
    return (gamma, beta, wq, wk, wv, wo, bo)


def reference_prenorm_attention_qkv(q, k, v, params, *, heads, dim_head,
                                    eps=1e-5):
    gamma, beta, wq, wk, wv, wo, bo = params

    def ln(x):
        mu = jnp.mean(x, axis=-1, keepdims=True)
        var = jnp.mean((x - mu) ** 2, axis=-1, keepdims=True)
        return (x - mu) / jnp.sqrt(var + eps) * gamma[0] + beta[0]

    qn, kn, vn = ln(q), ln(k), ln(v)
    B, N, D = q.shape
    Q = (qn @ wq).reshape(B, N, heads, dim_head).transpose(0, 2, 1, 3)
    K = (kn @ wk).reshape(B, N, heads, dim_head).transpose(0, 2, 1, 3)
    V = (vn @ wv).reshape(B, N, heads, dim_head).transpose(0, 2, 1, 3)
    dots = jnp.einsum('bhid,bhjd->bhij', Q, K) * (dim_head ** -0.5)
    attn = jax.nn.softmax(dots, axis=-1)
    out = jnp.einsum('bhij,bhjd->bhid', attn, V)
    out = out.transpose(0, 2, 1, 3).reshape(B, N, heads * dim_head)
    return out @ wo + bo[0] + q


if __name__ == "__main__":
    B, N, D = 2, 8, 32       # batch, seq, dim
    HEADS, DIM_HEAD = 4, 8   # inner_dim = 32

    key = jax.random.PRNGKey(0)
    kq, kk, kv, kp = jax.random.split(key, 4)
    q = jax.random.normal(kq, (B, N, D), jnp.float32)
    k = jax.random.normal(kk, (B, N, D), jnp.float32)
    v = jax.random.normal(kv, (B, N, D), jnp.float32)
    params = make_params(kp, D, HEADS, DIM_HEAD)

    out = prenorm_attention_qkv(q, k, v, params, heads=HEADS, dim_head=DIM_HEAD)
    out = jax.block_until_ready(out)

    ref = reference_prenorm_attention_qkv(q, k, v, params,
                                          heads=HEADS, dim_head=DIM_HEAD)
    assert out.shape == (B, N, D)
    # bf16 matmuls + approx softmax reciprocal => slightly looser tolerance.
    assert jnp.allclose(out, ref, atol=2e-2, rtol=2e-2), "mismatch vs reference"
    print("KERNEL_OK")
</pallas_src>

<mosaic_0001>
module attributes {stable_mosaic.version = 11 : i64} {
  func.func @_ln_qkv_proj_kernel(%arg0: i32, %arg1: memref<16x32xf32, #tpu.memory_space<vmem>>, %arg2: memref<16x32xf32, #tpu.memory_space<vmem>>, %arg3: memref<16x32xf32, #tpu.memory_space<vmem>>, %arg4: memref<1x32xf32, #tpu.memory_space<vmem>>, %arg5: memref<1x32xf32, #tpu.memory_space<vmem>>, %arg6: memref<32x32xbf16, #tpu.memory_space<vmem>>, %arg7: memref<32x32xbf16, #tpu.memory_space<vmem>>, %arg8: memref<32x32xbf16, #tpu.memory_space<vmem>>, %arg9: memref<16x32xbf16, #tpu.memory_space<vmem>>, %arg10: memref<16x32xbf16, #tpu.memory_space<vmem>>, %arg11: memref<16x32xbf16, #tpu.memory_space<vmem>>) attributes {dimension_semantics = [#tpu.dimension_semantics<parallel>], iteration_bounds = array<i64: 1>, scalar_prefetch = 0 : i64, scratch_operands = 0 : i64, tpu.core_type = #tpu.core_type<tc>, window_params = [{transform_indices = @transform_0, window_bounds = array<i64: 16, 32>}, {transform_indices = @transform_1, window_bounds = array<i64: 16, 32>}, {transform_indices = @transform_2, window_bounds = array<i64: 16, 32>}, {pipeline_mode = #tpu.pipeline_mode<synchronous>, transform_indices = @transform_3, window_bounds = array<i64: 1, 32>}, {pipeline_mode = #tpu.pipeline_mode<synchronous>, transform_indices = @transform_4, window_bounds = array<i64: 1, 32>}, {pipeline_mode = #tpu.pipeline_mode<synchronous>, transform_indices = @transform_5, window_bounds = array<i64: 32, 32>}, {pipeline_mode = #tpu.pipeline_mode<synchronous>, transform_indices = @transform_6, window_bounds = array<i64: 32, 32>}, {pipeline_mode = #tpu.pipeline_mode<synchronous>, transform_indices = @transform_7, window_bounds = array<i64: 32, 32>}, {transform_indices = @transform_8, window_bounds = array<i64: 16, 32>}, {transform_indices = @transform_9, window_bounds = array<i64: 16, 32>}, {transform_indices = @transform_10, window_bounds = array<i64: 16, 32>}]} {
    %c0 = arith.constant 0 : index
    %c0_0 = arith.constant 0 : index
    %0 = vector.load %arg4[%c0, %c0_0] : memref<1x32xf32, #tpu.memory_space<vmem>>, vector<1x32xf32>
    %c0_1 = arith.constant 0 : index
    %c0_2 = arith.constant 0 : index
    %1 = vector.load %arg5[%c0_1, %c0_2] : memref<1x32xf32, #tpu.memory_space<vmem>>, vector<1x32xf32>
    %c0_3 = arith.constant 0 : index
    %c0_4 = arith.constant 0 : index
    %2 = vector.load %arg1[%c0_3, %c0_4] : memref<16x32xf32, #tpu.memory_space<vmem>>, vector<16x32xf32>
    %cst = arith.constant dense<0.000000e+00> : vector<16xf32>
    %3 = vector.multi_reduction <add>, %2, %cst [1] : vector<16x32xf32> to vector<16xf32>
    %4 = vector.shape_cast %3 : vector<16xf32> to vector<16x1xf32>
    %cst_5 = arith.constant 3.200000e+01 : f32
    %5 = vector.broadcast %cst_5 : f32 to vector<16x1xf32>
    %6 = arith.divf %4, %5 : vector<16x1xf32>
    %7 = vector.broadcast %6 : vector<16x1xf32> to vector<16x32xf32>
    %8 = arith.subf %2, %7 : vector<16x32xf32>
    %9 = arith.mulf %8, %8 : vector<16x32xf32>
    %cst_6 = arith.constant dense<0.000000e+00> : vector<16xf32>
    %10 = vector.multi_reduction <add>, %9, %cst_6 [1] : vector<16x32xf32> to vector<16xf32>
    %11 = vector.shape_cast %10 : vector<16xf32> to vector<16x1xf32>
    %cst_7 = arith.constant 3.200000e+01 : f32
    %12 = vector.broadcast %cst_7 : f32 to vector<16x1xf32>
    %13 = arith.divf %11, %12 : vector<16x1xf32>
    %cst_8 = arith.constant 9.99999974E-6 : f32
    %14 = vector.broadcast %cst_8 : f32 to vector<16x1xf32>
    %15 = arith.addf %13, %14 : vector<16x1xf32>
    %16 = math.rsqrt %15 : vector<16x1xf32>
    %17 = vector.broadcast %16 : vector<16x1xf32> to vector<16x32xf32>
    %18 = arith.mulf %8, %17 : vector<16x32xf32>
    %19 = vector.broadcast %0 : vector<1x32xf32> to vector<16x32xf32>
    %20 = arith.mulf %18, %19 : vector<16x32xf32>
    %21 = vector.broadcast %1 : vector<1x32xf32> to vector<16x32xf32>
    %22 = arith.addf %20, %21 : vector<16x32xf32>
    %23 = arith.truncf %22 : vector<16x32xf32> to vector<16x32xbf16>
    %c0_9 = arith.constant 0 : index
    %c0_10 = arith.constant 0 : index
    %24 = vector.load %arg2[%c0_9, %c0_10] : memref<16x32xf32, #tpu.memory_space<vmem>>, vector<16x32xf32>
    %cst_11 = arith.constant dense<0.000000e+00> : vector<16xf32>
    %25 = vector.multi_reduction <add>, %24, %cst_11 [1] : vector<16x32xf32> to vector<16xf32>
    %26 = vector.shape_cast %25 : vector<16xf32> to vector<16x1xf32>
    %cst_12 = arith.constant 3.200000e+01 : f32
    %27 = vector.broadcast %cst_12 : f32 to vector<16x1xf32>
    %28 = arith.divf %26, %27 : vector<16x1xf32>
    %29 = vector.broadcast %28 : vector<16x1xf32> to vector<16x32xf32>
    %30 = arith.subf %24, %29 : vector<16x32xf32>
    %31 = arith.mulf %30, %30 : vector<16x32xf32>
    %cst_13 = arith.constant dense<0.000000e+00> : vector<16xf32>
    %32 = vector.multi_reduction <add>, %31, %cst_13 [1] : vector<16x32xf32> to vector<16xf32>
    %33 = vector.shape_cast %32 : vector<16xf32> to vector<16x1xf32>
    %cst_14 = arith.constant 3.200000e+01 : f32
    %34 = vector.broadcast %cst_14 : f32 to vector<16x1xf32>
    %35 = arith.divf %33, %34 : vector<16x1xf32>
    %cst_15 = arith.constant 9.99999974E-6 : f32
    %36 = vector.broadcast %cst_15 : f32 to vector<16x1xf32>
    %37 = arith.addf %35, %36 : vector<16x1xf32>
    %38 = math.rsqrt %37 : vector<16x1xf32>
    %39 = vector.broadcast %38 : vector<16x1xf32> to vector<16x32xf32>
    %40 = arith.mulf %30, %39 : vector<16x32xf32>
    %41 = vector.broadcast %0 : vector<1x32xf32> to vector<16x32xf32>
    %42 = arith.mulf %40, %41 : vector<16x32xf32>
    %43 = vector.broadcast %1 : vector<1x32xf32> to vector<16x32xf32>
    %44 = arith.addf %42, %43 : vector<16x32xf32>
    %45 = arith.truncf %44 : vector<16x32xf32> to vector<16x32xbf16>
    %c0_16 = arith.constant 0 : index
    %c0_17 = arith.constant 0 : index
    %46 = vector.load %arg3[%c0_16, %c0_17] : memref<16x32xf32, #tpu.memory_space<vmem>>, vector<16x32xf32>
    %cst_18 = arith.constant dense<0.000000e+00> : vector<16xf32>
    %47 = vector.multi_reduction <add>, %46, %cst_18 [1] : vector<16x32xf32> to vector<16xf32>
    %48 = vector.shape_cast %47 : vector<16xf32> to vector<16x1xf32>
    %cst_19 = arith.constant 3.200000e+01 : f32
    %49 = vector.broadcast %cst_19 : f32 to vector<16x1xf32>
    %50 = arith.divf %48, %49 : vector<16x1xf32>
    %51 = vector.broadcast %50 : vector<16x1xf32> to vector<16x32xf32>
    %52 = arith.subf %46, %51 : vector<16x32xf32>
    %53 = arith.mulf %52, %52 : vector<16x32xf32>
    %cst_20 = arith.constant dense<0.000000e+00> : vector<16xf32>
    %54 = vector.multi_reduction <add>, %53, %cst_20 [1] : vector<16x32xf32> to vector<16xf32>
    %55 = vector.shape_cast %54 : vector<16xf32> to vector<16x1xf32>
    %cst_21 = arith.constant 3.200000e+01 : f32
    %56 = vector.broadcast %cst_21 : f32 to vector<16x1xf32>
    %57 = arith.divf %55, %56 : vector<16x1xf32>
    %cst_22 = arith.constant 9.99999974E-6 : f32
    %58 = vector.broadcast %cst_22 : f32 to vector<16x1xf32>
    %59 = arith.addf %57, %58 : vector<16x1xf32>
    %60 = math.rsqrt %59 : vector<16x1xf32>
    %61 = vector.broadcast %60 : vector<16x1xf32> to vector<16x32xf32>
    %62 = arith.mulf %52, %61 : vector<16x32xf32>
    %63 = vector.broadcast %0 : vector<1x32xf32> to vector<16x32xf32>
    %64 = arith.mulf %62, %63 : vector<16x32xf32>
    %65 = vector.broadcast %1 : vector<1x32xf32> to vector<16x32xf32>
    %66 = arith.addf %64, %65 : vector<16x32xf32>
    %67 = arith.truncf %66 : vector<16x32xf32> to vector<16x32xbf16>
    %c0_23 = arith.constant 0 : index
    %c0_24 = arith.constant 0 : index
    %68 = vector.load %arg6[%c0_23, %c0_24] : memref<32x32xbf16, #tpu.memory_space<vmem>>, vector<32x32xbf16>
    %cst_25 = arith.constant dense<0.000000e+00> : vector<16x32xf32>
    %69 = tpu.matmul %23, %68, %cst_25 {dimension_numbers = #tpu.dot_dimension_numbers<[1], [0], [0], [1], [0, 0, 1, 1], [], []>} : vector<16x32xbf16>, vector<32x32xbf16>, vector<16x32xf32> -> vector<16x32xf32>
    %cst_26 = arith.constant 0.353553385 : f32
    %70 = vector.broadcast %cst_26 : f32 to vector<16x32xf32>
    %71 = arith.mulf %69, %70 : vector<16x32xf32>
    %72 = arith.truncf %71 : vector<16x32xf32> to vector<16x32xbf16>
    %c0_27 = arith.constant 0 : index
    %c0_28 = arith.constant 0 : index
    %73 = vector.load %arg9[%c0_27, %c0_28] : memref<16x32xbf16, #tpu.memory_space<vmem>>, vector<16x32xbf16>
    tpu.vector_store %arg9[%c0_27, %c0_28], %72 {strides = array<i32>} : memref<16x32xbf16, #tpu.memory_space<vmem>>, vector<16x32xbf16>,
    %c0_29 = arith.constant 0 : index
    %c0_30 = arith.constant 0 : index
    %74 = vector.load %arg7[%c0_29, %c0_30] : memref<32x32xbf16, #tpu.memory_space<vmem>>, vector<32x32xbf16>
    %cst_31 = arith.constant dense<0.000000e+00> : vector<16x32xf32>
    %75 = tpu.matmul %45, %74, %cst_31 {dimension_numbers = #tpu.dot_dimension_numbers<[1], [0], [0], [1], [0, 0, 1, 1], [], []>} : vector<16x32xbf16>, vector<32x32xbf16>, vector<16x32xf32> -> vector<16x32xf32>
    %76 = arith.truncf %75 : vector<16x32xf32> to vector<16x32xbf16>
    %c0_32 = arith.constant 0 : index
    %c0_33 = arith.constant 0 : index
    %77 = vector.load %arg10[%c0_32, %c0_33] : memref<16x32xbf16, #tpu.memory_space<vmem>>, vector<16x32xbf16>
    tpu.vector_store %arg10[%c0_32, %c0_33], %76 {strides = array<i32>} : memref<16x32xbf16, #tpu.memory_space<vmem>>, vector<16x32xbf16>,
    %c0_34 = arith.constant 0 : index
    %c0_35 = arith.constant 0 : index
    %78 = vector.load %arg8[%c0_34, %c0_35] : memref<32x32xbf16, #tpu.memory_space<vmem>>, vector<32x32xbf16>
    %cst_36 = arith.constant dense<0.000000e+00> : vector<16x32xf32>
    %79 = tpu.matmul %67, %78, %cst_36 {dimension_numbers = #tpu.dot_dimension_numbers<[1], [0], [0], [1], [0, 0, 1, 1], [], []>} : vector<16x32xbf16>, vector<32x32xbf16>, vector<16x32xf32> -> vector<16x32xf32>
    %80 = arith.truncf %79 : vector<16x32xf32> to vector<16x32xbf16>
    %c0_37 = arith.constant 0 : index
    %c0_38 = arith.constant 0 : index
    %81 = vector.load %arg11[%c0_37, %c0_38] : memref<16x32xbf16, #tpu.memory_space<vmem>>, vector<16x32xbf16>
    tpu.vector_store %arg11[%c0_37, %c0_38], %80 {strides = array<i32>} : memref<16x32xbf16, #tpu.memory_space<vmem>>, vector<16x32xbf16>,
    return
  }
  func.func @transform_0(%arg0: i32) -> (i32, i32) {
    %c0_i32 = arith.constant 0 : i32
    %c0_i32_0 = arith.constant 0 : i32
    return %arg0, %c0_i32 : i32, i32
  }
  func.func @transform_1(%arg0: i32) -> (i32, i32) {
    %c0_i32 = arith.constant 0 : i32
    %c0_i32_0 = arith.constant 0 : i32
    return %arg0, %c0_i32 : i32, i32
  }
  func.func @transform_2(%arg0: i32) -> (i32, i32) {
    %c0_i32 = arith.constant 0 : i32
    %c0_i32_0 = arith.constant 0 : i32
    return %arg0, %c0_i32 : i32, i32
  }
  func.func @transform_3(%arg0: i32) -> (i32, i32) {
    %c0_i32 = arith.constant 0 : i32
    %c0_i32_0 = arith.constant 0 : i32
    %c0_i32_1 = arith.constant 0 : i32
    return %c0_i32, %c0_i32_0 : i32, i32
  }
  func.func @transform_4(%arg0: i32) -> (i32, i32) {
    %c0_i32 = arith.constant 0 : i32
    %c0_i32_0 = arith.constant 0 : i32
    %c0_i32_1 = arith.constant 0 : i32
    return %c0_i32, %c0_i32_0 : i32, i32
  }
  func.func @transform_5(%arg0: i32) -> (i32, i32) {
    %c0_i32 = arith.constant 0 : i32
    %c0_i32_0 = arith.constant 0 : i32
    %c0_i32_1 = arith.constant 0 : i32
    return %c0_i32, %c0_i32_0 : i32, i32
  }
  func.func @transform_6(%arg0: i32) -> (i32, i32) {
    %c0_i32 = arith.constant 0 : i32
    %c0_i32_0 = arith.constant 0 : i32
    %c0_i32_1 = arith.constant 0 : i32
    return %c0_i32, %c0_i32_0 : i32, i32
  }
  func.func @transform_7(%arg0: i32) -> (i32, i32) {
    %c0_i32 = arith.constant 0 : i32
    %c0_i32_0 = arith.constant 0 : i32
    %c0_i32_1 = arith.constant 0 : i32
    return %c0_i32, %c0_i32_0 : i32, i32
  }
  func.func @transform_8(%arg0: i32) -> (i32, i32) {
    %c0_i32 = arith.constant 0 : i32
    %c0_i32_0 = arith.constant 0 : i32
    return %arg0, %c0_i32 : i32, i32
  }
  func.func @transform_9(%arg0: i32) -> (i32, i32) {
    %c0_i32 = arith.constant 0 : i32
    %c0_i32_0 = arith.constant 0 : i32
    return %arg0, %c0_i32 : i32, i32
  }
  func.func @transform_10(%arg0: i32) -> (i32, i32) {
    %c0_i32 = arith.constant 0 : i32
    %c0_i32_0 = arith.constant 0 : i32
    return %arg0, %c0_i32 : i32, i32
  }
}

</mosaic_0001>

<llo_original>
// kernel: tpu_custom_call.1
$region0: #{tpu_custom_call.1}
  #allocation0 [shape = 'u32[]', space=smem, size = 0x4, offset = 0x4, fixed_abs, tag = 'smem constant byte address 0x4 - core index']
  #allocation1 [shape = 'u32[144,128]{1,0:T(1,128)}', space=vmem, size = 0x12000, scoped, tag = 'internal scratch']
  %s0 = inlined_call_operand.hbm [shape: f32[16,32], index: 0, kind: input, shape index: {}]
  %s1 = inlined_call_operand.hbm [shape: f32[16,32], index: 1, kind: input, shape index: {}]
  %s2 = inlined_call_operand.hbm [shape: f32[16,32], index: 2, kind: input, shape index: {}]
  %s3 = inlined_call_operand.vmem [shape: f32[1,32], index: 3, kind: input, shape index: {}]
  %s4 = inlined_call_operand.vmem [shape: f32[1,32], index: 4, kind: input, shape index: {}]
  %s5 = inlined_call_operand.vmem [shape: bf16[32,32], index: 5, kind: input, shape index: {}]
  %s6 = inlined_call_operand.hbm [shape: bf16[32,32], index: 6, kind: input, shape index: {}]
  %s7 = inlined_call_operand.hbm [shape: bf16[32,32], index: 7, kind: input, shape index: {}]
  %s8 = inlined_call_operand.hbm [shape: bf16[16,32], index: 8, kind: output, shape index: {0}]
  %s9 = inlined_call_operand.hbm [shape: bf16[16,32], index: 9, kind: output, shape index: {1}]
  %s10 = inlined_call_operand.hbm [shape: bf16[16,32], index: 10, kind: output, shape index: {2}]
  %11 = xla_tuple %s8, %s9, %s10
  %s12 = sld [smem:[#allocation0]]
  $region78: #{tpu_custom_call.1} parent=0
    _
  %s14 = ssub.s32 1, %s12
  %s15 = scalar_select 0, %s14, %s12
  $region1: #{tpu_custom_call.1} parent=0
    #allocation2 [shape = 'u8[8192]{0}', space=vmem, size = 0x2000, scoped, tag = 'input window, operand 0, single buffered']
    #allocation3 [shape = 's32[1]{0}', space=sflag, size = 0x4, scoped, tag = 'scoped memory for tpu_custom_call.1']
    #allocation4 [shape = 's32[1]{0}', space=sflag, size = 0x4, scoped, tag = 'scoped memory for tpu_custom_call.1']
    #allocation5 [shape = 'u8[8192]{0}', space=vmem, size = 0x2000, scoped, tag = 'input window, operand 1, single buffered']
    #allocation6 [shape = 's32[1]{0}', space=sflag, size = 0x4, scoped, tag = 'scoped memory for tpu_custom_call.1']
    #allocation7 [shape = 'u8[8192]{0}', space=vmem, size = 0x2000, scoped, tag = 'input window, operand 2, single buffered']
    #allocation8 [shape = 'u8[8192]{0}', space=vmem, size = 0x2000, scoped, tag = 'input window, operand 6, single buffered']
    #allocation9 [shape = 's32[1]{0}', space=sflag, size = 0x4, scoped, tag = 'scoped memory for tpu_custom_call.1']
    #allocation10 [shape = 'u8[8192]{0}', space=vmem, size = 0x2000, scoped, tag = 'input window, operand 7, single buffered']
    #allocation11 [shape = 'u8[4096]{0}', space=vmem, size = 0x1000, scoped, tag = 'output window, operand 0, single buffered']
    #allocation12 [shape = 'u8[4096]{0}', space=vmem, size = 0x1000, scoped, tag = 'output window, operand 1, single buffered']
    #allocation13 [shape = 's32[1]{0}', space=sflag, size = 0x4, scoped, tag = 'scoped memory for tpu_custom_call.1']
    #allocation14 [shape = 'u8[4096]{0}', space=vmem, size = 0x1000, scoped, tag = 'output window, operand 2, single buffered']
    %16 = vsyncpa [#allocation3], 0
    %17 = vsyncpa [#allocation6], 0
    %18 = vsyncpa [#allocation9], 0
    %19 = vsyncpa [#allocation4], 0
    %20 = vsyncpa [#allocation13], 0
    // Predicated region
    $region2: #{tpu_custom_call.1} parent=1 // pred_check
      _
    $region3: #{tpu_custom_call.1} parent=1 // pred_check_branch
      %22 = sbr.rel (0) target = $region5
    $region4: #{tpu_custom_call.1} parent=1 // pred_region
      %s24 = ssub.s32 256, 256
      %25 = vsyncadd [#allocation3], %s24
      %s26 = sshll.u32 [#allocation2], 4
      %s27 = int_to_ptr.vmem [resolvable:$true] %s26
      %32 = dma.hbm_to_vmem [thread:$0]  %s0, 256, %s27, [#allocation3], 128, 128, 8
    $region5: #{tpu_custom_call.1} parent=1 // pred_fallthru
      _
    // Predicated region
    $region6: #{tpu_custom_call.1} parent=1 // pred_check
      _
    $region7: #{tpu_custom_call.1} parent=1 // pred_check_branch
      %34 = sbr.rel (0) target = $region9
    $region8: #{tpu_custom_call.1} parent=1 // pred_region
      %s36 = ssub.s32 256, 256
      %37 = vsyncadd [#allocation6], %s36
      %s38 = sshll.u32 [#allocation5], 4
      %s39 = int_to_ptr.vmem [resolvable:$true] %s38
      %44 = dma.hbm_to_vmem [thread:$0]  %s1, 256, %s39, [#allocation6], 128, 128, 8
    $region9: #{tpu_custom_call.1} parent=1 // pred_fallthru
      _
    // Predicated region
    $region10: #{tpu_custom_call.1} parent=1 // pred_check
      _
    $region11: #{tpu_custom_call.1} parent=1 // pred_check_branch
      %46 = sbr.rel (0) target = $region13
    $region12: #{tpu_custom_call.1} parent=1 // pred_region
      %s48 = ssub.s32 256, 256
      %49 = vsyncadd [#allocation6], %s48
      %s50 = sshll.u32 [#allocation7], 4
      %s51 = int_to_ptr.vmem [resolvable:$true] %s50
      %56 = dma.hbm_to_vmem [thread:$0]  %s2, 256, %s51, [#allocation6], 128, 128, 8
    $region13: #{tpu_custom_call.1} parent=1 // pred_fallthru
      _
    // Predicated region
    $region14: #{tpu_custom_call.1} parent=1 // pred_check
      _
    $region15: #{tpu_custom_call.1} parent=1 // pred_check_branch
      %58 = sbr.rel (0) target = $region17
    $region16: #{tpu_custom_call.1} parent=1 // pred_region
      _
    $region17: #{tpu_custom_call.1} parent=1 // pred_fallthru
      _
    // Predicated region
    $region18: #{tpu_custom_call.1} parent=1 // pred_check
      _
    $region19: #{tpu_custom_call.1} parent=1 // pred_check_branch
      %60 = sbr.rel (0) target = $region21
    $region20: #{tpu_custom_call.1} parent=1 // pred_region
      _
    $region21: #{tpu_custom_call.1} parent=1 // pred_fallthru
      _
    // Predicated region
    $region22: #{tpu_custom_call.1} parent=1 // pred_check
      _
    $region23: #{tpu_custom_call.1} parent=1 // pred_check_branch
      %62 = sbr.rel (0) target = $region25
    $region24: #{tpu_custom_call.1} parent=1 // pred_region
      _
    $region25: #{tpu_custom_call.1} parent=1 // pred_fallthru
      _
    // Predicated region
    $region26: #{tpu_custom_call.1} parent=1 // pred_check
      _
    $region27: #{tpu_custom_call.1} parent=1 // pred_check_branch
      %64 = sbr.rel (0) target = $region29
    $region28: #{tpu_custom_call.1} parent=1 // pred_region
      %s66 = ssub.s32 256, 256
      %67 = vsyncadd [#allocation9], %s66
      %s68 = sshll.u32 [#allocation8], 4
      %s69 = int_to_ptr.vmem [resolvable:$true] %s68
      %74 = dma.hbm_to_vmem [thread:$0]  %s6, 256, %s69, [#allocation9], 64, 64, 4
    $region29: #{tpu_custom_call.1} parent=1 // pred_fallthru
      _
    // Predicated region
    $region30: #{tpu_custom_call.1} parent=1 // pred_check
      _
    $region31: #{tpu_custom_call.1} parent=1 // pred_check_branch
      %76 = sbr.rel (0) target = $region33
    $region32: #{tpu_custom_call.1} parent=1 // pred_region
      %s78 = ssub.s32 256, 256
      %79 = vsyncadd [#allocation9], %s78
      %s80 = sshll.u32 [#allocation10], 4
      %s81 = int_to_ptr.vmem [resolvable:$true] %s80
      %86 = dma.hbm_to_vmem [thread:$0]  %s7, 256, %s81, [#allocation9], 64, 64, 4
    $region33: #{tpu_custom_call.1} parent=1 // pred_fallthru
      _
    // Predicated region
    $region34: #{tpu_custom_call.1} parent=1 // pred_check
      _
    $region35: #{tpu_custom_call.1} parent=1 // pred_check_branch
      %88 = sbr.rel (0) target = $region37
    $region36: #{tpu_custom_call.1} parent=1 // pred_region
      %89 = dma.done [#allocation3], 256
    $region37: #{tpu_custom_call.1} parent=1 // pred_fallthru
      _
    // Predicated region
    $region38: #{tpu_custom_call.1} parent=1 // pred_check
      _
    $region39: #{tpu_custom_call.1} parent=1 // pred_check_branch
      %91 = sbr.rel (0) target = $region41
    $region40: #{tpu_custom_call.1} parent=1 // pred_region
      %92 = dma.done [#allocation6], 256
    $region41: #{tpu_custom_call.1} parent=1 // pred_fallthru
      _
    // Predicated region
    $region42: #{tpu_custom_call.1} parent=1 // pred_check
      _
    $region43: #{tpu_custom_call.1} parent=1 // pred_check_branch
      %94 = sbr.rel (0) target = $region45
    $region44: #{tpu_custom_call.1} parent=1 // pred_region
      %95 = dma.done [#allocation6], 256
    $region45: #{tpu_custom_call.1} parent=1 // pred_fallthru
      _
    // Predicated region
    $region46: #{tpu_custom_call.1} parent=1 // pred_check
      _
    $region47: #{tpu_custom_call.1} parent=1 // pred_check_branch
      %97 = sbr.rel (0) target = $region49
    $region48: #{tpu_custom_call.1} parent=1 // pred_region
      %98 = dma.done [#allocation9], 256
    $region49: #{tpu_custom_call.1} parent=1 // pred_fallthru
      _
    // Predicated region
    $region50: #{tpu_custom_call.1} parent=1 // pred_check
      _
    $region51: #{tpu_custom_call.1} parent=1 // pred_check_branch
      %100 = sbr.rel (0) target = $region53
    $region52: #{tpu_custom_call.1} parent=1 // pred_region
      %101 = dma.done [#allocation9], 256
    $region53: #{tpu_custom_call.1} parent=1 // pred_fallthru
      _
    %v103 = vld [vmem:[%s3] sm:$0x1]
    %v104 = vld [vmem:[%s4] sm:$0x1]
    %v105 = vld [vmem:[#allocation2] sm:$0xff]
    %v106 = vld [vmem:[#allocation2 + $0x8] sm:$0xff]
    %vm107 = vcmask 261120
    %v108 = vsel %vm107, %v105, 0.0
    %109 = vadd.xlane.f32.xlu0 %v108
    %v110 = vpop.xlane.xlu0 %109
    %v111 = vsel %vm107, %v106, 0.0
    %112 = vadd.xlane.f32.xlu0 %v111
    %v113 = vpop.xlane.xlu0 %112
    %v114 = vrcp.pop 32.0
    %v115 = vmul.f32 %v110, %v114
    %v116 = vmul.f32 %v113, %v114
    %v117 = vsub.f32 %v105, %v115
    %v118 = vsub.f32 %v106, %v116
    %v119 = vmul.f32 %v117, %v117
    %v120 = vmul.f32 %v118, %v118
    %v121 = vsel %vm107, %v119, 0.0
    %122 = vadd.xlane.f32.xlu0 %v121
    %v123 = vpop.xlane.xlu0 %122
    %v124 = vsel %vm107, %v120, 0.0
    %125 = vadd.xlane.f32.xlu0 %v124
    %v126 = vpop.xlane.xlu0 %125
    %v127 = vmul.f32 %v123, %v114
    %v128 = vmul.f32 %v126, %v114
    %v129 = vadd.f32 %v127, 1e-05
    %v130 = vadd.f32 %v128, 1e-05
    %v131 = vrsqrt.pop %v129
    %v132 = vrsqrt.pop %v130
    %v133 = vmul.f32 %v117, %v131
    %v134 = vmul.f32 %v118, %v132
    %v136 = vlaneseq
    %v137 = vshrl.u32 %v136, 7
    %v138 = vsub.s32 0, %v137
    %v139 = vrot.slane %v103, %v138
    %v141 = vmul.f32 %v133, %v139
    %v142 = vmul.f32 %v134, %v139
    %v144 = vlaneseq
    %v145 = vshrl.u32 %v144, 7
    %v146 = vsub.s32 0, %v145
    %v147 = vrot.slane %v104, %v146
    %v149 = vadd.f32 %v141, %v147
    %v150 = vadd.f32 %v142, %v147
    %v151 = vpack.c.bf16 %v150, %v149
    %v152 = vld [vmem:[#allocation5] sm:$0xff]
    %v153 = vld [vmem:[#allocation5 + $0x8] sm:$0xff]
    %v154 = vsel %vm107, %v152, 0.0
    %155 = vadd.xlane.f32.xlu0 %v154
    %v156 = vpop.xlane.xlu0 %155
    %v157 = vsel %vm107, %v153, 0.0
    %158 = vadd.xlane.f32.xlu0 %v157
    %v159 = vpop.xlane.xlu0 %158
    %v160 = vmul.f32 %v156, %v114
    %v161 = vmul.f32 %v159, %v114
    %v162 = vsub.f32 %v152, %v160
    %v163 = vsub.f32 %v153, %v161
    %v164 = vmul.f32 %v162, %v162
    %v165 = vmul.f32 %v163, %v163
    %v166 = vsel %vm107, %v164, 0.0
    %167 = vadd.xlane.f32.xlu0 %v166
    %v168 = vpop.xlane.xlu0 %167
    %v169 = vsel %vm107, %v165, 0.0
    %170 = vadd.xlane.f32.xlu0 %v169
    %v171 = vpop.xlane.xlu0 %170
    %v172 = vmul.f32 %v168, %v114
    %v173 = vmul.f32 %v171, %v114
    %v174 = vadd.f32 %v172, 1e-05
    %v175 = vadd.f32 %v173, 1e-05
    %v176 = vrsqrt.pop %v174
    %v177 = vrsqrt.pop %v175
    %v178 = vmul.f32 %v162, %v176
    %v179 = vmul.f32 %v163, %v177
    %v180 = vmul.f32 %v178, %v139
    %v181 = vmul.f32 %v179, %v139
    %v182 = vadd.f32 %v180, %v147
    %v183 = vadd.f32 %v181, %v147
    %v184 = vpack.c.bf16 %v183, %v182
    %v185 = vld [vmem:[#allocation7] sm:$0xff]
    %v186 = vld [vmem:[#allocation7 + $0x8] sm:$0xff]
    %v187 = vsel %vm107, %v185, 0.0
    %188 = vadd.xlane.f32.xlu0 %v187
    %v189 = vpop.xlane.xlu0 %188
    %v190 = vsel %vm107, %v186, 0.0
    %191 = vadd.xlane.f32.xlu0 %v190
    %v192 = vpop.xlane.xlu0 %191
    %v193 = vmul.f32 %v189, %v114
    %v194 = vmul.f32 %v192, %v114
    %v195 = vsub.f32 %v185, %v193
    %v196 = vsub.f32 %v186, %v194
    %v197 = vmul.f32 %v195, %v195
    %v198 = vmul.f32 %v196, %v196
    %v199 = vsel %vm107, %v197, 0.0
    %200 = vadd.xlane.f32.xlu0 %v199
    %v201 = vpop.xlane.xlu0 %200
    %v202 = vsel %vm107, %v198, 0.0
    %203 = vadd.xlane.f32.xlu0 %v202
    %v204 = vpop.xlane.xlu0 %203
    %v205 = vmul.f32 %v201, %v114
    %v206 = vmul.f32 %v204, %v114
    %v207 = vadd.f32 %v205, 1e-05
    %v208 = vadd.f32 %v206, 1e-05
    %v209 = vrsqrt.pop %v207
    %v210 = vrsqrt.pop %v208
    %v211 = vmul.f32 %v195, %v209
    %v212 = vmul.f32 %v196, %v210
    %v213 = vmul.f32 %v211, %v139
    %v214 = vmul.f32 %v212, %v139
    %v215 = vadd.f32 %v213, %v147
    %v216 = vadd.f32 %v214, %v147
    %v217 = vpack.c.bf16 %v216, %v215
    %v218 = vld [vmem:[%s5] sm:$0xf]
    %v219 = vld [vmem:[%s5 + $0x4] sm:$0xf]
    %v220 = vld [vmem:[%s5 + $0x8] sm:$0xf]
    %v221 = vld [vmem:[%s5 + $0xc] sm:$0xf]
    %v226 = vunpack.c.l.b16 %v218
    %v227 = vunpack.c.l.b16 %v219
    %v228 = vunpack.c.l.b16 %v220
    %v229 = vunpack.c.l.b16 %v221
    %v230 = vpack.c.b16 %v227, %v226
    %v231 = vpack.c.b16 %v229, %v228
    %v235 = vsel %vm107, %v151, 0
    %237 = vmatprep.subr.bf16.mxu0 0
    %238 = vmatpush1.bf16.msra.mxu0 %v230
    %239 = vmatprep.subr.bf16.mxu0 0
    %240 = vmatpush1.bf16.msra.mxu0 %v231
    %241 = vmatprep.subr.bf16.mxu0 0
    %242 = vmatpush1.bf16.msra.mxu0 0
    %243 = vmatprep.subr.bf16.mxu0 0
    %244 = vmatpush1.bf16.msra.mxu0 0
    %245 = vmatprep.subr.bf16.mxu0 0
    %246 = vmatpush1.bf16.msra.mxu0 0
    %247 = vmatprep.subr.bf16.mxu0 0
    %248 = vmatpush1.bf16.msra.mxu0 0
    %249 = vmatprep.subr.bf16.mxu0 0
    %250 = vmatpush1.bf16.msra.mxu0 0
    %251 = vmatprep.subr.bf16.mxu0 0
    %252 = vmatpush1.bf16.msra.mxu0 0
    %253 = vmatprep.subr.bf16.mxu0 0
    %254 = vmatpush1.bf16.msra.mxu0 0
    %255 = vmatprep.subr.bf16.mxu0 0
    %256 = vmatpush1.bf16.msra.mxu0 0
    %257 = vmatprep.subr.bf16.mxu0 0
    %258 = vmatpush1.bf16.msra.mxu0 0
    %259 = vmatprep.subr.bf16.mxu0 0
    %260 = vmatpush1.bf16.msra.mxu0 0
    %261 = vmatprep.subr.bf16.mxu0 0
    %262 = vmatpush1.bf16.msra.mxu0 0
    %263 = vmatprep.subr.bf16.mxu0 0
    %264 = vmatpush1.bf16.msra.mxu0 0
    %265 = vmatprep.subr.bf16.mxu0 0
    %266 = vmatpush1.bf16.msra.mxu0 0
    %267 = vmatprep.subr.bf16.mxu0 0
    %268 = vmatpush1.bf16.msra.mxu0 0
    %269 = vmatprep.mubr.bf16.mxu0 0
    %270 = vmatmul.mubr.bf16.gmra.mrb[0].mxu0 %v235
    %v271 = vpop.f32.mrb[0].mxu0
    %v272 = vadd.f32 0.0, %v271
    %v273 = vpop.f32.mrb[0].mxu0
    %v274 = vpop.f32.mrb[0].mxu0
    %v275 = vadd.f32 0.0, %v274
    %v276 = vpop.f32.mrb[0].mxu0
    %277 = vdwg.mxu0
    %v278 = vmul.f32 %v272, 0.35355338
    %v279 = vmul.f32 %v275, 0.35355338
    %v280 = vpack.c.bf16 %v279, %v278
    %v282 = vunpack.c.l.b16 %v280
    %v283 = vunpack.c.h.b16 %v280
    %v284 = vpack.c.b16 %v282, %v282
    %v285 = vpack.c.b16 %v283, %v283
    %vm288 = vcmask 257024
    %289 = vst.msk [vmem:[#allocation11] sm:$0xf] %vm288, %v284
    %290 = vst.msk [vmem:[#allocation11 + $0x4] sm:$0xf] %vm288, %v285
    %v291 = vld [vmem:[#allocation8] sm:$0xf]
    %v292 = vld [vmem:[#allocation8 + $0x4] sm:$0xf]
    %v293 = vld [vmem:[#allocation8 + $0x8] sm:$0xf]
    %v294 = vld [vmem:[#allocation8 + $0xc] sm:$0xf]
    %v299 = vunpack.c.l.b16 %v291
    %v300 = vunpack.c.l.b16 %v292
    %v301 = vunpack.c.l.b16 %v293
    %v302 = vunpack.c.l.b16 %v294
    %v303 = vpack.c.b16 %v300, %v299
    %v304 = vpack.c.b16 %v302, %v301
    %v308 = vsel %vm107, %v184, 0
    %310 = vmatprep.subr.bf16.mxu0 0
    %311 = vmatpush1.bf16.msra.mxu0 %v303
    %312 = vmatprep.subr.bf16.mxu0 0
    %313 = vmatpush1.bf16.msra.mxu0 %v304
    %314 = vmatprep.subr.bf16.mxu0 0
    %315 = vmatpush1.bf16.msra.mxu0 0
    %316 = vmatprep.subr.bf16.mxu0 0
    %317 = vmatpush1.bf16.msra.mxu0 0
    %318 = vmatprep.subr.bf16.mxu0 0
    %319 = vmatpush1.bf16.msra.mxu0 0
    %320 = vmatprep.subr.bf16.mxu0 0
    %321 = vmatpush1.bf16.msra.mxu0 0
    %322 = vmatprep.subr.bf16.mxu0 0
    %323 = vmatpush1.bf16.msra.mxu0 0
    %324 = vmatprep.subr.bf16.mxu0 0
    %325 = vmatpush1.bf16.msra.mxu0 0
    %326 = vmatprep.subr.bf16.mxu0 0
    %327 = vmatpush1.bf16.msra.mxu0 0
    %328 = vmatprep.subr.bf16.mxu0 0
    %329 = vmatpush1.bf16.msra.mxu0 0
    %330 = vmatprep.subr.bf16.mxu0 0
    %331 = vmatpush1.bf16.msra.mxu0 0
    %332 = vmatprep.subr.bf16.mxu0 0
    %333 = vmatpush1.bf16.msra.mxu0 0
    %334 = vmatprep.subr.bf16.mxu0 0
    %335 = vmatpush1.bf16.msra.mxu0 0
    %336 = vmatprep.subr.bf16.mxu0 0
    %337 = vmatpush1.bf16.msra.mxu0 0
    %338 = vmatprep.subr.bf16.mxu0 0
    %339 = vmatpush1.bf16.msra.mxu0 0
    %340 = vmatprep.subr.bf16.mxu0 0
    %341 = vmatpush1.bf16.msra.mxu0 0
    %342 = vmatprep.mubr.bf16.mxu0 0
    %343 = vmatmul.mubr.bf16.gmra.mrb[0].mxu0 %v308
    %v344 = vpop.f32.mrb[0].mxu0
    %v345 = vadd.f32 0.0, %v344
    %v346 = vpop.f32.mrb[0].mxu0
    %v347 = vpop.f32.mrb[0].mxu0
    %v348 = vadd.f32 0.0, %v347
    %v349 = vpop.f32.mrb[0].mxu0
    %350 = vdwg.mxu0
    %v351 = vpack.c.bf16 %v348, %v345
    %v353 = vunpack.c.l.b16 %v351
    %v354 = vunpack.c.h.b16 %v351
    %v355 = vpack.c.b16 %v353, %v353
    %v356 = vpack.c.b16 %v354, %v354
    %359 = vst.msk [vmem:[#allocation12] sm:$0xf] %vm288, %v355
    %360 = vst.msk [vmem:[#allocation12 + $0x4] sm:$0xf] %vm288, %v356
    %v361 = vld [vmem:[#allocation10] sm:$0xf]
    %v362 = vld [vmem:[#allocation10 + $0x4] sm:$0xf]
    %v363 = vld [vmem:[#allocation10 + $0x8] sm:$0xf]
    %v364 = vld [vmem:[#allocation10 + $0xc] sm:$0xf]
    %v369 = vunpack.c.l.b16 %v361
    %v370 = vunpack.c.l.b16 %v362
    %v371 = vunpack.c.l.b16 %v363
    %v372 = vunpack.c.l.b16 %v364
    %v373 = vpack.c.b16 %v370, %v369
    %v374 = vpack.c.b16 %v372, %v371
    %v378 = vsel %vm107, %v217, 0
    %380 = vmatprep.subr.bf16.mxu0 0
    %381 = vmatpush1.bf16.msra.mxu0 %v373
    %382 = vmatprep.subr.bf16.mxu0 0
    %383 = vmatpush1.bf16.msra.mxu0 %v374
    %384 = vmatprep.subr.bf16.mxu0 0
    %385 = vmatpush1.bf16.msra.mxu0 0
    %386 = vmatprep.subr.bf16.mxu0 0
    %387 = vmatpush1.bf16.msra.mxu0 0
    %388 = vmatprep.subr.bf16.mxu0 0
    %389 = vmatpush1.bf16.msra.mxu0 0
    %390 = vmatprep.subr.bf16.mxu0 0
    %391 = vmatpush1.bf16.msra.mxu0 0
    %392 = vmatprep.subr.bf16.mxu0 0
    %393 = vmatpush1.bf16.msra.mxu0 0
    %394 = vmatprep.subr.bf16.mxu0 0
    %395 = vmatpush1.bf16.msra.mxu0 0
    %396 = vmatprep.subr.bf16.mxu0 0
    %397 = vmatpush1.bf16.msra.mxu0 0
    %398 = vmatprep.subr.bf16.mxu0 0
    %399 = vmatpush1.bf16.msra.mxu0 0
    %400 = vmatprep.subr.bf16.mxu0 0
    %401 = vmatpush1.bf16.msra.mxu0 0
    %402 = vmatprep.subr.bf16.mxu0 0
    %403 = vmatpush1.bf16.msra.mxu0 0
    %404 = vmatprep.subr.bf16.mxu0 0
    %405 = vmatpush1.bf16.msra.mxu0 0
    %406 = vmatprep.subr.bf16.mxu0 0
    %407 = vmatpush1.bf16.msra.mxu0 0
    %408 = vmatprep.subr.bf16.mxu0 0
    %409 = vmatpush1.bf16.msra.mxu0 0
    %410 = vmatprep.subr.bf16.mxu0 0
    %411 = vmatpush1.bf16.msra.mxu0 0
    %412 = vmatprep.mubr.bf16.mxu0 0
    %413 = vmatmul.mubr.bf16.gmra.mrb[0].mxu0 %v378
    %v414 = vpop.f32.mrb[0].mxu0
    %v415 = vadd.f32 0.0, %v414
    %v416 = vpop.f32.mrb[0].mxu0
    %v417 = vpop.f32.mrb[0].mxu0
    %v418 = vadd.f32 0.0, %v417
    %v419 = vpop.f32.mrb[0].mxu0
    %420 = vdwg.mxu0
    %v421 = vpack.c.bf16 %v418, %v415
    %v423 = vunpack.c.l.b16 %v421
    %v424 = vunpack.c.h.b16 %v421
    %v425 = vpack.c.b16 %v423, %v423
    %v426 = vpack.c.b16 %v424, %v424
    %429 = vst.msk [vmem:[#allocation14] sm:$0xf] %vm288, %v425
    %430 = vst.msk [vmem:[#allocation14 + $0x4] sm:$0xf] %vm288, %v426
    // Predicated region
    $region54: #{tpu_custom_call.1} parent=1 // pred_check
      _
    $region55: #{tpu_custom_call.1} parent=1 // pred_check_branch
      %432 = sbr.rel (0) target = $region57
    $region56: #{tpu_custom_call.1} parent=1 // pred_region
      %s434 = ssub.s32 128, 128
      %435 = vsyncadd [#allocation4], %s434
      %s436 = sshll.u32 [#allocation11], 4
      %s437 = int_to_ptr.vmem [resolvable:$true] %s436
      %442 = dma.vmem_to_hbm [thread:$0]  %s437, 128, %s8, [#allocation4], 64, 64, 4
    $region57: #{tpu_custom_call.1} parent=1 // pred_fallthru
      _
    // Predicated region
    $region58: #{tpu_custom_call.1} parent=1 // pred_check
      _
    $region59: #{tpu_custom_call.1} parent=1 // pred_check_branch
      %444 = sbr.rel (0) target = $region61
    $region60: #{tpu_custom_call.1} parent=1 // pred_region
      %s446 = ssub.s32 128, 128
      %447 = vsyncadd [#allocation13], %s446
      %s448 = sshll.u32 [#allocation12], 4
      %s449 = int_to_ptr.vmem [resolvable:$true] %s448
      %454 = dma.vmem_to_hbm [thread:$0]  %s449, 128, %s9, [#allocation13], 64, 64, 4
    $region61: #{tpu_custom_call.1} parent=1 // pred_fallthru
      _
    // Predicated region
    $region62: #{tpu_custom_call.1} parent=1 // pred_check
      _
    $region63: #{tpu_custom_call.1} parent=1 // pred_check_branch
      %456 = sbr.rel (0) target = $region65
    $region64: #{tpu_custom_call.1} parent=1 // pred_region
      %s458 = ssub.s32 128, 128
      %459 = vsyncadd [#allocation13], %s458
      %s460 = sshll.u32 [#allocation14], 4
      %s461 = int_to_ptr.vmem [resolvable:$true] %s460
      %466 = dma.vmem_to_hbm [thread:$0]  %s461, 128, %s10, [#allocation13], 64, 64, 4
    $region65: #{tpu_custom_call.1} parent=1 // pred_fallthru
      _
    // Predicated region
    $region66: #{tpu_custom_call.1} parent=1 // pred_check
      _
    $region67: #{tpu_custom_call.1} parent=1 // pred_check_branch
      %468 = sbr.rel (0) target = $region69
    $region68: #{tpu_custom_call.1} parent=1 // pred_region
      %469 = dma.done [#allocation4], 128
    $region69: #{tpu_custom_call.1} parent=1 // pred_fallthru
      _
    // Predicated region
    $region70: #{tpu_custom_call.1} parent=1 // pred_check
      _
    $region71: #{tpu_custom_call.1} parent=1 // pred_check_branch
      %471 = sbr.rel (0) target = $region73
    $region72: #{tpu_custom_call.1} parent=1 // pred_region
      %472 = dma.done [#allocation13], 128
    $region73: #{tpu_custom_call.1} parent=1 // pred_fallthru
      _
    // Predicated region
    $region74: #{tpu_custom_call.1} parent=1 // pred_check
      _
    $region75: #{tpu_custom_call.1} parent=1 // pred_check_branch
      %474 = sbr.rel (0) target = $region77
    $region76: #{tpu_custom_call.1} parent=1 // pred_region
      %475 = dma.done [#allocation13], 128
    $region77: #{tpu_custom_call.1} parent=1 // pred_fallthru
      _
    %476 = vsyncpa [#allocation3], 1
    %477 = vsyncpa [#allocation6], 1
    %478 = vsyncpa [#allocation9], 1
    %479 = vsyncpa [#allocation4], 1
    %480 = vsyncpa [#allocation13], 1

</llo_original>
